<compile_context>
chip_gen: v6e
topology: v6e:2x2x1
jax: 0.10.0
libtpu: 0.0.40
codegen_flags: <defaults>
</compile_context>

<pallas_src>
import jax
import jax.numpy as jnp
from jax.experimental import pallas as pl
from jax.experimental.pallas import tpu as pltpu  # noqa: F401  (kept for TPU-specific tuning hooks)

EPS = 1e-3


def _bn_kernel(x_ref, gamma_ref, beta_ref, o_ref):
    # x_ref: (N, C, HW) f32, gamma/beta: (C, 1) f32, o_ref: (N, C, HW) f32
    x = x_ref[...].astype(jnp.float32)
    n, c, hw = x.shape
    inv_r = 1.0 / (n * hw)

    # one-pass per-channel (per-sublane-row) statistics, lane-axis reduce (XLU)
    s = jnp.sum(x, axis=(0, 2), keepdims=True)        # (1, C, 1)
    sq = jnp.sum(x * x, axis=(0, 2), keepdims=True)   # (1, C, 1)
    mean = s * inv_r
    var = jnp.maximum(sq * inv_r - mean * mean, 0.0)   # biased variance (training norm)
    inv = jax.lax.rsqrt(var + EPS)                     # EUP

    # fold affine into per-channel scale/shift (1-vreg work), then single FMA-style pass
    scale = inv * gamma_ref[...]                       # (C,1) broadcasts to (1,C,1)
    shift = beta_ref[...] - mean * scale
    o_ref[...] = (x * scale + shift).astype(o_ref.dtype)


def batchnorm2d(x_nchw, gamma, beta):
    """x_nchw: (N, C, H, W); gamma, beta: (C,). Returns (N, C, H, W)."""
    n, c, h, w = x_nchw.shape
    hw = h * w

    # pure reshapes only -- no NCHW<->NHWC transposes, no extra HBM round trips
    x3d = x_nchw.reshape(n, c, hw)
    gamma2d = gamma.reshape(c, 1).astype(jnp.float32)
    beta2d = beta.reshape(c, 1).astype(jnp.float32)

    y3d = pl.pallas_call(
        _bn_kernel,
        out_shape=jax.ShapeDtypeStruct((n, c, hw), x3d.dtype),
        in_specs=[
            pl.BlockSpec((n, c, hw), lambda: (0, 0, 0)),
            pl.BlockSpec((c, 1), lambda: (0, 0)),
            pl.BlockSpec((c, 1), lambda: (0, 0)),
        ],
        out_specs=pl.BlockSpec((n, c, hw), lambda: (0, 0, 0)),
    )(x3d, gamma2d, beta2d)

    return y3d.reshape(n, c, h, w)


def reference_bn(x, gamma, beta):
    # pure-JAX reference of PyTorch BatchNorm2d training-mode normalization
    mean = jnp.mean(x, axis=(0, 2, 3), keepdims=True)
    var = jnp.mean((x - mean) ** 2, axis=(0, 2, 3), keepdims=True)
    g = gamma.reshape(1, -1, 1, 1)
    b = beta.reshape(1, -1, 1, 1)
    return (x - mean) / jnp.sqrt(var + EPS) * g + b


if __name__ == "__main__":
    key = jax.random.PRNGKey(0)
    kx, kg, kb = jax.random.split(key, 3)

    N, C, H, W = 1, 128, 12, 12          # shapes implied by the module
    x = jax.random.normal(kx, (N, C, H, W), dtype=jnp.float32)
    # deterministic parameter init (synthetic; PyTorch default would be gamma=1, beta=0)
    gamma = 1.0 + 0.1 * jax.random.normal(kg, (C,), dtype=jnp.float32)
    beta = 0.1 * jax.random.normal(kb, (C,), dtype=jnp.float32)

    y = batchnorm2d(x, gamma, beta)
    y = jax.block_until_ready(y)

    y_ref = reference_bn(x, gamma, beta)
    assert y.shape == (N, C, H, W)
    assert jnp.max(jnp.abs(y - y_ref)) < 1e-4

    print("KERNEL_OK")
</pallas_src>

<mosaic_0001>
module attributes {stable_mosaic.version = 11 : i64} {
  func.func @_bn_kernel(%arg0: memref<1x128x144xf32, #tpu.memory_space<vmem>>, %arg1: memref<128x1xf32, #tpu.memory_space<vmem>>, %arg2: memref<128x1xf32, #tpu.memory_space<vmem>>, %arg3: memref<1x128x144xf32, #tpu.memory_space<vmem>>) attributes {dimension_semantics = [], scalar_prefetch = 0 : i64, scratch_operands = 0 : i64, tpu.core_type = #tpu.core_type<tc>} {
    %c0 = arith.constant 0 : index
    %c0_0 = arith.constant 0 : index
    %c0_1 = arith.constant 0 : index
    %0 = vector.load %arg0[%c0, %c0_0, %c0_1] : memref<1x128x144xf32, #tpu.memory_space<vmem>>, vector<1x128x144xf32>
    %cst = arith.constant dense<0.000000e+00> : vector<128xf32>
    %1 = vector.multi_reduction <add>, %0, %cst [0, 2] : vector<1x128x144xf32> to vector<128xf32>
    %2 = vector.shape_cast %1 : vector<128xf32> to vector<1x128x1xf32>
    %3 = arith.mulf %0, %0 : vector<1x128x144xf32>
    %cst_2 = arith.constant dense<0.000000e+00> : vector<128xf32>
    %4 = vector.multi_reduction <add>, %3, %cst_2 [0, 2] : vector<1x128x144xf32> to vector<128xf32>
    %5 = vector.shape_cast %4 : vector<128xf32> to vector<1x128x1xf32>
    %cst_3 = arith.constant 0.0069444445 : f32
    %6 = vector.broadcast %cst_3 : f32 to vector<1x128x1xf32>
    %7 = arith.mulf %2, %6 : vector<1x128x1xf32>
    %cst_4 = arith.constant 0.0069444445 : f32
    %8 = vector.broadcast %cst_4 : f32 to vector<1x128x1xf32>
    %9 = arith.mulf %5, %8 : vector<1x128x1xf32>
    %10 = arith.mulf %7, %7 : vector<1x128x1xf32>
    %11 = arith.subf %9, %10 : vector<1x128x1xf32>
    %cst_5 = arith.constant 0.000000e+00 : f32
    %12 = vector.broadcast %cst_5 : f32 to vector<1x128x1xf32>
    %13 = arith.maximumf %11, %12 : vector<1x128x1xf32>
    %cst_6 = arith.constant 1.000000e-03 : f32
    %14 = vector.broadcast %cst_6 : f32 to vector<1x128x1xf32>
    %15 = arith.addf %13, %14 : vector<1x128x1xf32>
    %16 = math.rsqrt %15 : vector<1x128x1xf32>
    %c0_7 = arith.constant 0 : index
    %c0_8 = arith.constant 0 : index
    %17 = vector.load %arg1[%c0_7, %c0_8] : memref<128x1xf32, #tpu.memory_space<vmem>>, vector<128x1xf32>
    %18 = vector.shape_cast %17 : vector<128x1xf32> to vector<1x128x1xf32>
    %19 = arith.mulf %16, %18 : vector<1x128x1xf32>
    %c0_9 = arith.constant 0 : index
    %c0_10 = arith.constant 0 : index
    %20 = vector.load %arg2[%c0_9, %c0_10] : memref<128x1xf32, #tpu.memory_space<vmem>>, vector<128x1xf32>
    %21 = arith.mulf %7, %19 : vector<1x128x1xf32>
    %22 = vector.shape_cast %20 : vector<128x1xf32> to vector<1x128x1xf32>
    %23 = arith.subf %22, %21 : vector<1x128x1xf32>
    %24 = vector.broadcast %19 : vector<1x128x1xf32> to vector<1x128x144xf32>
    %25 = arith.mulf %0, %24 : vector<1x128x144xf32>
    %26 = vector.broadcast %23 : vector<1x128x1xf32> to vector<1x128x144xf32>
    %27 = arith.addf %25, %26 : vector<1x128x144xf32>
    %c0_11 = arith.constant 0 : index
    %c0_12 = arith.constant 0 : index
    %c0_13 = arith.constant 0 : index
    %28 = vector.load %arg3[%c0_11, %c0_12, %c0_13] : memref<1x128x144xf32, #tpu.memory_space<vmem>>, vector<1x128x144xf32>
    tpu.vector_store %arg3[%c0_11, %c0_12, %c0_13], %27 {strides = array<i32>} : memref<1x128x144xf32, #tpu.memory_space<vmem>>, vector<1x128x144xf32>,
    return
  }
}

</mosaic_0001>

<llo_original>
// kernel: tpu_custom_call.1
$region0: #{tpu_custom_call.1}
  #allocation0 [shape = 'u32[]', space=smem, size = 0x4, offset = 0x4, fixed_abs, tag = 'smem constant byte address 0x4 - core index']
  #allocation1 [shape = 'u32[144,128]{1,0:T(1,128)}', space=vmem, size = 0x12000, scoped, tag = 'internal scratch']
  %s0 = inlined_call_operand.vmem [shape: f32[1,128,144], index: 0, kind: input, shape index: {}]
  %s1 = inlined_call_operand.vmem [shape: f32[128,1], index: 1, kind: input, shape index: {}]
  %s2 = inlined_call_operand.vmem [shape: f32[128,1], index: 2, kind: input, shape index: {}]
  %s3 = inlined_call_operand.vmem [shape: f32[1,128,144], index: 3, kind: output, shape index: {}]
  %s4 = sld [smem:[#allocation0]]
  $region22: #{tpu_custom_call.1} parent=0
    _
  %s6 = ssub.s32 1, %s4
  %s7 = scalar_select 0, %s6, %s4
  // Predicated region
  $region2: #{tpu_custom_call.1} parent=0 // pred_check
    _
  $region3: #{tpu_custom_call.1} parent=0 // pred_check_branch
    %9 = sbr.rel (0) target = $region5
  $region4: #{tpu_custom_call.1} parent=0 // pred_region
    _
  $region5: #{tpu_custom_call.1} parent=0 // pred_fallthru
    _
  // Predicated region
  $region6: #{tpu_custom_call.1} parent=0 // pred_check
    _
  $region7: #{tpu_custom_call.1} parent=0 // pred_check_branch
    %11 = sbr.rel (0) target = $region9
  $region8: #{tpu_custom_call.1} parent=0 // pred_region
    _
  $region9: #{tpu_custom_call.1} parent=0 // pred_fallthru
    _
  // Predicated region
  $region10: #{tpu_custom_call.1} parent=0 // pred_check
    _
  $region11: #{tpu_custom_call.1} parent=0 // pred_check_branch
    %13 = sbr.rel (0) target = $region13
  $region12: #{tpu_custom_call.1} parent=0 // pred_region
    _
  $region13: #{tpu_custom_call.1} parent=0 // pred_fallthru
    _
  %v14 = vld [vmem:[%s0] sm:$0xff]
  %v15 = vld [vmem:[%s0 + $0x8] sm:$0xff]
  %v16 = vld [vmem:[%s0 + $0x10] sm:$0xff]
  %v17 = vld [vmem:[%s0 + $0x18] sm:$0xff]
  %v18 = vld [vmem:[%s0 + $0x20] sm:$0xff]
  %v19 = vld [vmem:[%s0 + $0x28] sm:$0xff]
  %v20 = vld [vmem:[%s0 + $0x30] sm:$0xff]
  %v21 = vld [vmem:[%s0 + $0x38] sm:$0xff]
  %v22 = vld [vmem:[%s0 + $0x40] sm:$0xff]
  %v23 = vld [vmem:[%s0 + $0x48] sm:$0xff]
  %v24 = vld [vmem:[%s0 + $0x50] sm:$0xff]
  %v25 = vld [vmem:[%s0 + $0x58] sm:$0xff]
  %v26 = vld [vmem:[%s0 + $0x60] sm:$0xff]
  %v27 = vld [vmem:[%s0 + $0x68] sm:$0xff]
  %v28 = vld [vmem:[%s0 + $0x70] sm:$0xff]
  %v29 = vld [vmem:[%s0 + $0x78] sm:$0xff]
  %v30 = vld [vmem:[%s0 + $0x80] sm:$0xff]
  %v31 = vld [vmem:[%s0 + $0x88] sm:$0xff]
  %v32 = vld [vmem:[%s0 + $0x90] sm:$0xff]
  %v33 = vld [vmem:[%s0 + $0x98] sm:$0xff]
  %v34 = vld [vmem:[%s0 + $0xa0] sm:$0xff]
  %v35 = vld [vmem:[%s0 + $0xa8] sm:$0xff]
  %v36 = vld [vmem:[%s0 + $0xb0] sm:$0xff]
  %v37 = vld [vmem:[%s0 + $0xb8] sm:$0xff]
  %v38 = vld [vmem:[%s0 + $0xc0] sm:$0xff]
  %v39 = vld [vmem:[%s0 + $0xc8] sm:$0xff]
  %v40 = vld [vmem:[%s0 + $0xd0] sm:$0xff]
  %v41 = vld [vmem:[%s0 + $0xd8] sm:$0xff]
  %v42 = vld [vmem:[%s0 + $0xe0] sm:$0xff]
  %v43 = vld [vmem:[%s0 + $0xe8] sm:$0xff]
  %v44 = vld [vmem:[%s0 + $0xf0] sm:$0xff]
  %v45 = vld [vmem:[%s0 + $0xf8] sm:$0xff]
  %vm46 = vcmask 130048
  %v47 = vsel %vm46, %v15, 0.0
  %v48 = vadd.f32 %v14, %v47
  %49 = vadd.xlane.f32.xlu0 %v48
  %v50 = vpop.xlane.xlu0 %49
  %v51 = vsel %vm46, %v17, 0.0
  %v52 = vadd.f32 %v16, %v51
  %53 = vadd.xlane.f32.xlu0 %v52
  %v54 = vpop.xlane.xlu0 %53
  %v55 = vsel %vm46, %v19, 0.0
  %v56 = vadd.f32 %v18, %v55
  %57 = vadd.xlane.f32.xlu0 %v56
  %v58 = vpop.xlane.xlu0 %57
  %v59 = vsel %vm46, %v21, 0.0
  %v60 = vadd.f32 %v20, %v59
  %61 = vadd.xlane.f32.xlu0 %v60
  %v62 = vpop.xlane.xlu0 %61
  %v63 = vsel %vm46, %v23, 0.0
  %v64 = vadd.f32 %v22, %v63
  %65 = vadd.xlane.f32.xlu0 %v64
  %v66 = vpop.xlane.xlu0 %65
  %v67 = vsel %vm46, %v25, 0.0
  %v68 = vadd.f32 %v24, %v67
  %69 = vadd.xlane.f32.xlu0 %v68
  %v70 = vpop.xlane.xlu0 %69
  %v71 = vsel %vm46, %v27, 0.0
  %v72 = vadd.f32 %v26, %v71
  %73 = vadd.xlane.f32.xlu0 %v72
  %v74 = vpop.xlane.xlu0 %73
  %v75 = vsel %vm46, %v29, 0.0
  %v76 = vadd.f32 %v28, %v75
  %77 = vadd.xlane.f32.xlu0 %v76
  %v78 = vpop.xlane.xlu0 %77
  %v79 = vsel %vm46, %v31, 0.0
  %v80 = vadd.f32 %v30, %v79
  %81 = vadd.xlane.f32.xlu0 %v80
  %v82 = vpop.xlane.xlu0 %81
  %v83 = vsel %vm46, %v33, 0.0
  %v84 = vadd.f32 %v32, %v83
  %85 = vadd.xlane.f32.xlu0 %v84
  %v86 = vpop.xlane.xlu0 %85
  %v87 = vsel %vm46, %v35, 0.0
  %v88 = vadd.f32 %v34, %v87
  %89 = vadd.xlane.f32.xlu0 %v88
  %v90 = vpop.xlane.xlu0 %89
  %v91 = vsel %vm46, %v37, 0.0
  %v92 = vadd.f32 %v36, %v91
  %93 = vadd.xlane.f32.xlu0 %v92
  %v94 = vpop.xlane.xlu0 %93
  %v95 = vsel %vm46, %v39, 0.0
  %v96 = vadd.f32 %v38, %v95
  %97 = vadd.xlane.f32.xlu0 %v96
  %v98 = vpop.xlane.xlu0 %97
  %v99 = vsel %vm46, %v41, 0.0
  %v100 = vadd.f32 %v40, %v99
  %101 = vadd.xlane.f32.xlu0 %v100
  %v102 = vpop.xlane.xlu0 %101
  %v103 = vsel %vm46, %v43, 0.0
  %v104 = vadd.f32 %v42, %v103
  %105 = vadd.xlane.f32.xlu0 %v104
  %v106 = vpop.xlane.xlu0 %105
  %v107 = vsel %vm46, %v45, 0.0
  %v108 = vadd.f32 %v44, %v107
  %109 = vadd.xlane.f32.xlu0 %v108
  %v110 = vpop.xlane.xlu0 %109
  %v111 = vmul.f32 %v14, %v14
  %v112 = vmul.f32 %v15, %v15
  %v113 = vmul.f32 %v16, %v16
  %v114 = vmul.f32 %v17, %v17
  %v115 = vmul.f32 %v18, %v18
  %v116 = vmul.f32 %v19, %v19
  %v117 = vmul.f32 %v20, %v20
  %v118 = vmul.f32 %v21, %v21
  %v119 = vmul.f32 %v22, %v22
  %v120 = vmul.f32 %v23, %v23
  %v121 = vmul.f32 %v24, %v24
  %v122 = vmul.f32 %v25, %v25
  %v123 = vmul.f32 %v26, %v26
  %v124 = vmul.f32 %v27, %v27
  %v125 = vmul.f32 %v28, %v28
  %v126 = vmul.f32 %v29, %v29
  %v127 = vmul.f32 %v30, %v30
  %v128 = vmul.f32 %v31, %v31
  %v129 = vmul.f32 %v32, %v32
  %v130 = vmul.f32 %v33, %v33
  %v131 = vmul.f32 %v34, %v34
  %v132 = vmul.f32 %v35, %v35
  %v133 = vmul.f32 %v36, %v36
  %v134 = vmul.f32 %v37, %v37
  %v135 = vmul.f32 %v38, %v38
  %v136 = vmul.f32 %v39, %v39
  %v137 = vmul.f32 %v40, %v40
  %v138 = vmul.f32 %v41, %v41
  %v139 = vmul.f32 %v42, %v42
  %v140 = vmul.f32 %v43, %v43
  %v141 = vmul.f32 %v44, %v44
  %v142 = vmul.f32 %v45, %v45
  %v143 = vsel %vm46, %v112, 0.0
  %v144 = vadd.f32 %v111, %v143
  %145 = vadd.xlane.f32.xlu0 %v144
  %v146 = vpop.xlane.xlu0 %145
  %v147 = vsel %vm46, %v114, 0.0
  %v148 = vadd.f32 %v113, %v147
  %149 = vadd.xlane.f32.xlu0 %v148
  %v150 = vpop.xlane.xlu0 %149
  %v151 = vsel %vm46, %v116, 0.0
  %v152 = vadd.f32 %v115, %v151
  %153 = vadd.xlane.f32.xlu0 %v152
  %v154 = vpop.xlane.xlu0 %153
  %v155 = vsel %vm46, %v118, 0.0
  %v156 = vadd.f32 %v117, %v155
  %157 = vadd.xlane.f32.xlu0 %v156
  %v158 = vpop.xlane.xlu0 %157
  %v159 = vsel %vm46, %v120, 0.0
  %v160 = vadd.f32 %v119, %v159
  %161 = vadd.xlane.f32.xlu0 %v160
  %v162 = vpop.xlane.xlu0 %161
  %v163 = vsel %vm46, %v122, 0.0
  %v164 = vadd.f32 %v121, %v163
  %165 = vadd.xlane.f32.xlu0 %v164
  %v166 = vpop.xlane.xlu0 %165
  %v167 = vsel %vm46, %v124, 0.0
  %v168 = vadd.f32 %v123, %v167
  %169 = vadd.xlane.f32.xlu0 %v168
  %v170 = vpop.xlane.xlu0 %169
  %v171 = vsel %vm46, %v126, 0.0
  %v172 = vadd.f32 %v125, %v171
  %173 = vadd.xlane.f32.xlu0 %v172
  %v174 = vpop.xlane.xlu0 %173
  %v175 = vsel %vm46, %v128, 0.0
  %v176 = vadd.f32 %v127, %v175
  %177 = vadd.xlane.f32.xlu0 %v176
  %v178 = vpop.xlane.xlu0 %177
  %v179 = vsel %vm46, %v130, 0.0
  %v180 = vadd.f32 %v129, %v179
  %181 = vadd.xlane.f32.xlu0 %v180
  %v182 = vpop.xlane.xlu0 %181
  %v183 = vsel %vm46, %v132, 0.0
  %v184 = vadd.f32 %v131, %v183
  %185 = vadd.xlane.f32.xlu0 %v184
  %v186 = vpop.xlane.xlu0 %185
  %v187 = vsel %vm46, %v134, 0.0
  %v188 = vadd.f32 %v133, %v187
  %189 = vadd.xlane.f32.xlu0 %v188
  %v190 = vpop.xlane.xlu0 %189
  %v191 = vsel %vm46, %v136, 0.0
  %v192 = vadd.f32 %v135, %v191
  %193 = vadd.xlane.f32.xlu0 %v192
  %v194 = vpop.xlane.xlu0 %193
  %v195 = vsel %vm46, %v138, 0.0
  %v196 = vadd.f32 %v137, %v195
  %197 = vadd.xlane.f32.xlu0 %v196
  %v198 = vpop.xlane.xlu0 %197
  %v199 = vsel %vm46, %v140, 0.0
  %v200 = vadd.f32 %v139, %v199
  %201 = vadd.xlane.f32.xlu0 %v200
  %v202 = vpop.xlane.xlu0 %201
  %v203 = vsel %vm46, %v142, 0.0
  %v204 = vadd.f32 %v141, %v203
  %205 = vadd.xlane.f32.xlu0 %v204
  %v206 = vpop.xlane.xlu0 %205
  %v207 = vmul.f32 %v50, 0.0069444445
  %v208 = vmul.f32 %v54, 0.0069444445
  %v209 = vmul.f32 %v58, 0.0069444445
  %v210 = vmul.f32 %v62, 0.0069444445
  %v211 = vmul.f32 %v66, 0.0069444445
  %v212 = vmul.f32 %v70, 0.0069444445
  %v213 = vmul.f32 %v74, 0.0069444445
  %v214 = vmul.f32 %v78, 0.0069444445
  %v215 = vmul.f32 %v82, 0.0069444445
  %v216 = vmul.f32 %v86, 0.0069444445
  %v217 = vmul.f32 %v90, 0.0069444445
  %v218 = vmul.f32 %v94, 0.0069444445
  %v219 = vmul.f32 %v98, 0.0069444445
  %v220 = vmul.f32 %v102, 0.0069444445
  %v221 = vmul.f32 %v106, 0.0069444445
  %v222 = vmul.f32 %v110, 0.0069444445
  %v223 = vmul.f32 %v146, 0.0069444445
  %v224 = vmul.f32 %v150, 0.0069444445
  %v225 = vmul.f32 %v154, 0.0069444445
  %v226 = vmul.f32 %v158, 0.0069444445
  %v227 = vmul.f32 %v162, 0.0069444445
  %v228 = vmul.f32 %v166, 0.0069444445
  %v229 = vmul.f32 %v170, 0.0069444445
  %v230 = vmul.f32 %v174, 0.0069444445
  %v231 = vmul.f32 %v178, 0.0069444445
  %v232 = vmul.f32 %v182, 0.0069444445
  %v233 = vmul.f32 %v186, 0.0069444445
  %v234 = vmul.f32 %v190, 0.0069444445
  %v235 = vmul.f32 %v194, 0.0069444445
  %v236 = vmul.f32 %v198, 0.0069444445
  %v237 = vmul.f32 %v202, 0.0069444445
  %v238 = vmul.f32 %v206, 0.0069444445
  %v239 = vmul.f32 %v207, %v207
  %v240 = vmul.f32 %v208, %v208
  %v241 = vmul.f32 %v209, %v209
  %v242 = vmul.f32 %v210, %v210
  %v243 = vmul.f32 %v211, %v211
  %v244 = vmul.f32 %v212, %v212
  %v245 = vmul.f32 %v213, %v213
  %v246 = vmul.f32 %v214, %v214
  %v247 = vmul.f32 %v215, %v215
  %v248 = vmul.f32 %v216, %v216
  %v249 = vmul.f32 %v217, %v217
  %v250 = vmul.f32 %v218, %v218
  %v251 = vmul.f32 %v219, %v219
  %v252 = vmul.f32 %v220, %v220
  %v253 = vmul.f32 %v221, %v221
  %v254 = vmul.f32 %v222, %v222
  %v255 = vsub.f32 %v223, %v239
  %v256 = vsub.f32 %v224, %v240
  %v257 = vsub.f32 %v225, %v241
  %v258 = vsub.f32 %v226, %v242
  %v259 = vsub.f32 %v227, %v243
  %v260 = vsub.f32 %v228, %v244
  %v261 = vsub.f32 %v229, %v245
  %v262 = vsub.f32 %v230, %v246
  %v263 = vsub.f32 %v231, %v247
  %v264 = vsub.f32 %v232, %v248
  %v265 = vsub.f32 %v233, %v249
  %v266 = vsub.f32 %v234, %v250
  %v267 = vsub.f32 %v235, %v251
  %v268 = vsub.f32 %v236, %v252
  %v269 = vsub.f32 %v237, %v253
  %v270 = vsub.f32 %v238, %v254
  %v271 = vmax.f32 %v255, 0.0
  %v272 = vmax.f32 %v256, 0.0
  %v273 = vmax.f32 %v257, 0.0
  %v274 = vmax.f32 %v258, 0.0
  %v275 = vmax.f32 %v259, 0.0
  %v276 = vmax.f32 %v260, 0.0
  %v277 = vmax.f32 %v261, 0.0
  %v278 = vmax.f32 %v262, 0.0
  %v279 = vmax.f32 %v263, 0.0
  %v280 = vmax.f32 %v264, 0.0
  %v281 = vmax.f32 %v265, 0.0
  %v282 = vmax.f32 %v266, 0.0
  %v283 = vmax.f32 %v267, 0.0
  %v284 = vmax.f32 %v268, 0.0
  %v285 = vmax.f32 %v269, 0.0
  %v286 = vmax.f32 %v270, 0.0
  %v287 = vadd.f32 %v271, 0.001
  %v288 = vadd.f32 %v272, 0.001
  %v289 = vadd.f32 %v273, 0.001
  %v290 = vadd.f32 %v274, 0.001
  %v291 = vadd.f32 %v275, 0.001
  %v292 = vadd.f32 %v276, 0.001
  %v293 = vadd.f32 %v277, 0.001
  %v294 = vadd.f32 %v278, 0.001
  %v295 = vadd.f32 %v279, 0.001
  %v296 = vadd.f32 %v280, 0.001
  %v297 = vadd.f32 %v281, 0.001
  %v298 = vadd.f32 %v282, 0.001
  %v299 = vadd.f32 %v283, 0.001
  %v300 = vadd.f32 %v284, 0.001
  %v301 = vadd.f32 %v285, 0.001
  %v302 = vadd.f32 %v286, 0.001
  %v303 = vrsqrt.pop %v287
  %v304 = vrsqrt.pop %v288
  %v305 = vrsqrt.pop %v289
  %v306 = vrsqrt.pop %v290
  %v307 = vrsqrt.pop %v291
  %v308 = vrsqrt.pop %v292
  %v309 = vrsqrt.pop %v293
  %v310 = vrsqrt.pop %v294
  %v311 = vrsqrt.pop %v295
  %v312 = vrsqrt.pop %v296
  %v313 = vrsqrt.pop %v297
  %v314 = vrsqrt.pop %v298
  %v315 = vrsqrt.pop %v299
  %v316 = vrsqrt.pop %v300
  %v317 = vrsqrt.pop %v301
  %v318 = vrsqrt.pop %v302
  %v319 = vld [vmem:[%s1] sm:$0xff]
  %v320 = vld [vmem:[%s1 + $0x8] sm:$0xff]
  %v321 = vld [vmem:[%s1 + $0x10] sm:$0xff]
  %v322 = vld [vmem:[%s1 + $0x18] sm:$0xff]
  %v323 = vld [vmem:[%s1 + $0x20] sm:$0xff]
  %v324 = vld [vmem:[%s1 + $0x28] sm:$0xff]
  %v325 = vld [vmem:[%s1 + $0x30] sm:$0xff]
  %v326 = vld [vmem:[%s1 + $0x38] sm:$0xff]
  %v327 = vld [vmem:[%s1 + $0x40] sm:$0xff]
  %v328 = vld [vmem:[%s1 + $0x48] sm:$0xff]
  %v329 = vld [vmem:[%s1 + $0x50] sm:$0xff]
  %v330 = vld [vmem:[%s1 + $0x58] sm:$0xff]
  %v331 = vld [vmem:[%s1 + $0x60] sm:$0xff]
  %v332 = vld [vmem:[%s1 + $0x68] sm:$0xff]
  %v333 = vld [vmem:[%s1 + $0x70] sm:$0xff]
  %v334 = vld [vmem:[%s1 + $0x78] sm:$0xff]
  %v335 = vmul.f32 %v303, %v319
  %v336 = vmul.f32 %v304, %v320
  %v337 = vmul.f32 %v305, %v321
  %v338 = vmul.f32 %v306, %v322
  %v339 = vmul.f32 %v307, %v323
  %v340 = vmul.f32 %v308, %v324
  %v341 = vmul.f32 %v309, %v325
  %v342 = vmul.f32 %v310, %v326
  %v343 = vmul.f32 %v311, %v327
  %v344 = vmul.f32 %v312, %v328
  %v345 = vmul.f32 %v313, %v329
  %v346 = vmul.f32 %v314, %v330
  %v347 = vmul.f32 %v315, %v331
  %v348 = vmul.f32 %v316, %v332
  %v349 = vmul.f32 %v317, %v333
  %v350 = vmul.f32 %v318, %v334
  %v351 = vld [vmem:[%s2] sm:$0xff]
  %v352 = vld [vmem:[%s2 + $0x8] sm:$0xff]
  %v353 = vld [vmem:[%s2 + $0x10] sm:$0xff]
  %v354 = vld [vmem:[%s2 + $0x18] sm:$0xff]
  %v355 = vld [vmem:[%s2 + $0x20] sm:$0xff]
  %v356 = vld [vmem:[%s2 + $0x28] sm:$0xff]
  %v357 = vld [vmem:[%s2 + $0x30] sm:$0xff]
  %v358 = vld [vmem:[%s2 + $0x38] sm:$0xff]
  %v359 = vld [vmem:[%s2 + $0x40] sm:$0xff]
  %v360 = vld [vmem:[%s2 + $0x48] sm:$0xff]
  %v361 = vld [vmem:[%s2 + $0x50] sm:$0xff]
  %v362 = vld [vmem:[%s2 + $0x58] sm:$0xff]
  %v363 = vld [vmem:[%s2 + $0x60] sm:$0xff]
  %v364 = vld [vmem:[%s2 + $0x68] sm:$0xff]
  %v365 = vld [vmem:[%s2 + $0x70] sm:$0xff]
  %v366 = vld [vmem:[%s2 + $0x78] sm:$0xff]
  %v367 = vmul.f32 %v207, %v335
  %v368 = vmul.f32 %v208, %v336
  %v369 = vmul.f32 %v209, %v337
  %v370 = vmul.f32 %v210, %v338
  %v371 = vmul.f32 %v211, %v339
  %v372 = vmul.f32 %v212, %v340
  %v373 = vmul.f32 %v213, %v341
  %v374 = vmul.f32 %v214, %v342
  %v375 = vmul.f32 %v215, %v343
  %v376 = vmul.f32 %v216, %v344
  %v377 = vmul.f32 %v217, %v345
  %v378 = vmul.f32 %v218, %v346
  %v379 = vmul.f32 %v219, %v347
  %v380 = vmul.f32 %v220, %v348
  %v381 = vmul.f32 %v221, %v349
  %v382 = vmul.f32 %v222, %v350
  %v383 = vsub.f32 %v351, %v367
  %v384 = vsub.f32 %v352, %v368
  %v385 = vsub.f32 %v353, %v369
  %v386 = vsub.f32 %v354, %v370
  %v387 = vsub.f32 %v355, %v371
  %v388 = vsub.f32 %v356, %v372
  %v389 = vsub.f32 %v357, %v373
  %v390 = vsub.f32 %v358, %v374
  %v391 = vsub.f32 %v359, %v375
  %v392 = vsub.f32 %v360, %v376
  %v393 = vsub.f32 %v361, %v377
  %v394 = vsub.f32 %v362, %v378
  %v395 = vsub.f32 %v363, %v379
  %v396 = vsub.f32 %v364, %v380
  %v397 = vsub.f32 %v365, %v381
  %v398 = vsub.f32 %v366, %v382
  %400 = vset.pattern.permute.xlu0 0
  %401 = vperm.xlu0 %400, %v335
  %v402 = vpop.permute.xlu0 %401
  %405 = vset.pattern.permute.xlu0 0
  %406 = vperm.xlu0 %405, %v336
  %v407 = vpop.permute.xlu0 %406
  %410 = vset.pattern.permute.xlu0 0
  %411 = vperm.xlu0 %410, %v337
  %v412 = vpop.permute.xlu0 %411
  %415 = vset.pattern.permute.xlu0 0
  %416 = vperm.xlu0 %415, %v338
  %v417 = vpop.permute.xlu0 %416
  %420 = vset.pattern.permute.xlu0 0
  %421 = vperm.xlu0 %420, %v339
  %v422 = vpop.permute.xlu0 %421
  %425 = vset.pattern.permute.xlu0 0
  %426 = vperm.xlu0 %425, %v340
  %v427 = vpop.permute.xlu0 %426
  %430 = vset.pattern.permute.xlu0 0
  %431 = vperm.xlu0 %430, %v341
  %v432 = vpop.permute.xlu0 %431
  %435 = vset.pattern.permute.xlu0 0
  %436 = vperm.xlu0 %435, %v342
  %v437 = vpop.permute.xlu0 %436
  %440 = vset.pattern.permute.xlu0 0
  %441 = vperm.xlu0 %440, %v343
  %v442 = vpop.permute.xlu0 %441
  %445 = vset.pattern.permute.xlu0 0
  %446 = vperm.xlu0 %445, %v344
  %v447 = vpop.permute.xlu0 %446
  %450 = vset.pattern.permute.xlu0 0
  %451 = vperm.xlu0 %450, %v345
  %v452 = vpop.permute.xlu0 %451
  %455 = vset.pattern.permute.xlu0 0
  %456 = vperm.xlu0 %455, %v346
  %v457 = vpop.permute.xlu0 %456
  %460 = vset.pattern.permute.xlu0 0
  %461 = vperm.xlu0 %460, %v347
  %v462 = vpop.permute.xlu0 %461
  %465 = vset.pattern.permute.xlu0 0
  %466 = vperm.xlu0 %465, %v348
  %v467 = vpop.permute.xlu0 %466
  %470 = vset.pattern.permute.xlu0 0
  %471 = vperm.xlu0 %470, %v349
  %v472 = vpop.permute.xlu0 %471
  %475 = vset.pattern.permute.xlu0 0
  %476 = vperm.xlu0 %475, %v350
  %v477 = vpop.permute.xlu0 %476
  %v479 = vmul.f32 %v14, %v402
  %v480 = vmul.f32 %v15, %v402
  %v481 = vmul.f32 %v16, %v407
  %v482 = vmul.f32 %v17, %v407
  %v483 = vmul.f32 %v18, %v412
  %v484 = vmul.f32 %v19, %v412
  %v485 = vmul.f32 %v20, %v417
  %v486 = vmul.f32 %v21, %v417
  %v487 = vmul.f32 %v22, %v422
  %v488 = vmul.f32 %v23, %v422
  %v489 = vmul.f32 %v24, %v427
  %v490 = vmul.f32 %v25, %v427
  %v491 = vmul.f32 %v26, %v432
  %v492 = vmul.f32 %v27, %v432
  %v493 = vmul.f32 %v28, %v437
  %v494 = vmul.f32 %v29, %v437
  %v495 = vmul.f32 %v30, %v442
  %v496 = vmul.f32 %v31, %v442
  %v497 = vmul.f32 %v32, %v447
  %v498 = vmul.f32 %v33, %v447
  %v499 = vmul.f32 %v34, %v452
  %v500 = vmul.f32 %v35, %v452
  %v501 = vmul.f32 %v36, %v457
  %v502 = vmul.f32 %v37, %v457
  %v503 = vmul.f32 %v38, %v462
  %v504 = vmul.f32 %v39, %v462
  %v505 = vmul.f32 %v40, %v467
  %v506 = vmul.f32 %v41, %v467
  %v507 = vmul.f32 %v42, %v472
  %v508 = vmul.f32 %v43, %v472
  %v509 = vmul.f32 %v44, %v477
  %v510 = vmul.f32 %v45, %v477
  %512 = vset.pattern.permute.xlu0 0
  %513 = vperm.xlu0 %512, %v383
  %v514 = vpop.permute.xlu0 %513
  %517 = vset.pattern.permute.xlu0 0
  %518 = vperm.xlu0 %517, %v384
  %v519 = vpop.permute.xlu0 %518
  %522 = vset.pattern.permute.xlu0 0
  %523 = vperm.xlu0 %522, %v385
  %v524 = vpop.permute.xlu0 %523
  %527 = vset.pattern.permute.xlu0 0
  %528 = vperm.xlu0 %527, %v386
  %v529 = vpop.permute.xlu0 %528
  %532 = vset.pattern.permute.xlu0 0
  %533 = vperm.xlu0 %532, %v387
  %v534 = vpop.permute.xlu0 %533
  %537 = vset.pattern.permute.xlu0 0
  %538 = vperm.xlu0 %537, %v388
  %v539 = vpop.permute.xlu0 %538
  %542 = vset.pattern.permute.xlu0 0
  %543 = vperm.xlu0 %542, %v389
  %v544 = vpop.permute.xlu0 %543
  %547 = vset.pattern.permute.xlu0 0
  %548 = vperm.xlu0 %547, %v390
  %v549 = vpop.permute.xlu0 %548
  %552 = vset.pattern.permute.xlu0 0
  %553 = vperm.xlu0 %552, %v391
  %v554 = vpop.permute.xlu0 %553
  %557 = vset.pattern.permute.xlu0 0
  %558 = vperm.xlu0 %557, %v392
  %v559 = vpop.permute.xlu0 %558
  %562 = vset.pattern.permute.xlu0 0
  %563 = vperm.xlu0 %562, %v393
  %v564 = vpop.permute.xlu0 %563
  %567 = vset.pattern.permute.xlu0 0
  %568 = vperm.xlu0 %567, %v394
  %v569 = vpop.permute.xlu0 %568
  %572 = vset.pattern.permute.xlu0 0
  %573 = vperm.xlu0 %572, %v395
  %v574 = vpop.permute.xlu0 %573
  %577 = vset.pattern.permute.xlu0 0
  %578 = vperm.xlu0 %577, %v396
  %v579 = vpop.permute.xlu0 %578
  %582 = vset.pattern.permute.xlu0 0
  %583 = vperm.xlu0 %582, %v397
  %v584 = vpop.permute.xlu0 %583
  %587 = vset.pattern.permute.xlu0 0
  %588 = vperm.xlu0 %587, %v398
  %v589 = vpop.permute.xlu0 %588
  %v591 = vadd.f32 %v479, %v514
  %v592 = vadd.f32 %v480, %v514
  %v593 = vadd.f32 %v481, %v519
  %v594 = vadd.f32 %v482, %v519
  %v595 = vadd.f32 %v483, %v524
  %v596 = vadd.f32 %v484, %v524
  %v597 = vadd.f32 %v485, %v529
  %v598 = vadd.f32 %v486, %v529
  %v599 = vadd.f32 %v487, %v534
  %v600 = vadd.f32 %v488, %v534
  %v601 = vadd.f32 %v489, %v539
  %v602 = vadd.f32 %v490, %v539
  %v603 = vadd.f32 %v491, %v544
  %v604 = vadd.f32 %v492, %v544
  %v605 = vadd.f32 %v493, %v549
  %v606 = vadd.f32 %v494, %v549
  %v607 = vadd.f32 %v495, %v554
  %v608 = vadd.f32 %v496, %v554
  %v609 = vadd.f32 %v497, %v559
  %v610 = vadd.f32 %v498, %v559
  %v611 = vadd.f32 %v499, %v564
  %v612 = vadd.f32 %v500, %v564
  %v613 = vadd.f32 %v501, %v569
  %v614 = vadd.f32 %v502, %v569
  %v615 = vadd.f32 %v503, %v574
  %v616 = vadd.f32 %v504, %v574
  %v617 = vadd.f32 %v505, %v579
  %v618 = vadd.f32 %v506, %v579
  %v619 = vadd.f32 %v507, %v584
  %v620 = vadd.f32 %v508, %v584
  %v621 = vadd.f32 %v509, %v589
  %v622 = vadd.f32 %v510, %v589
  %623 = vst [vmem:[%s3] sm:$0xff] %v591
  %624 = vst.msk [vmem:[%s3 + $0x8] sm:$0xff] %vm46, %v592
  %625 = vst [vmem:[%s3 + $0x10] sm:$0xff] %v593
  %626 = vst.msk [vmem:[%s3 + $0x18] sm:$0xff] %vm46, %v594
  %627 = vst [vmem:[%s3 + $0x20] sm:$0xff] %v595
  %628 = vst.msk [vmem:[%s3 + $0x28] sm:$0xff] %vm46, %v596
  %629 = vst [vmem:[%s3 + $0x30] sm:$0xff] %v597
  %630 = vst.msk [vmem:[%s3 + $0x38] sm:$0xff] %vm46, %v598
  %631 = vst [vmem:[%s3 + $0x40] sm:$0xff] %v599
  %632 = vst.msk [vmem:[%s3 + $0x48] sm:$0xff] %vm46, %v600
  %633 = vst [vmem:[%s3 + $0x50] sm:$0xff] %v601
  %634 = vst.msk [vmem:[%s3 + $0x58] sm:$0xff] %vm46, %v602
  %635 = vst [vmem:[%s3 + $0x60] sm:$0xff] %v603
  %636 = vst.msk [vmem:[%s3 + $0x68] sm:$0xff] %vm46, %v604
  %637 = vst [vmem:[%s3 + $0x70] sm:$0xff] %v605
  %638 = vst.msk [vmem:[%s3 + $0x78] sm:$0xff] %vm46, %v606
  %639 = vst [vmem:[%s3 + $0x80] sm:$0xff] %v607
  %640 = vst.msk [vmem:[%s3 + $0x88] sm:$0xff] %vm46, %v608
  %641 = vst [vmem:[%s3 + $0x90] sm:$0xff] %v609
  %642 = vst.msk [vmem:[%s3 + $0x98] sm:$0xff] %vm46, %v610
  %643 = vst [vmem:[%s3 + $0xa0] sm:$0xff] %v611
  %644 = vst.msk [vmem:[%s3 + $0xa8] sm:$0xff] %vm46, %v612
  %645 = vst [vmem:[%s3 + $0xb0] sm:$0xff] %v613
  %646 = vst.msk [vmem:[%s3 + $0xb8] sm:$0xff] %vm46, %v614
  %647 = vst [vmem:[%s3 + $0xc0] sm:$0xff] %v615
  %648 = vst.msk [vmem:[%s3 + $0xc8] sm:$0xff] %vm46, %v616
  %649 = vst [vmem:[%s3 + $0xd0] sm:$0xff] %v617
  %650 = vst.msk [vmem:[%s3 + $0xd8] sm:$0xff] %vm46, %v618
  %651 = vst [vmem:[%s3 + $0xe0] sm:$0xff] %v619
  %652 = vst.msk [vmem:[%s3 + $0xe8] sm:$0xff] %vm46, %v620
  %653 = vst [vmem:[%s3 + $0xf0] sm:$0xff] %v621
  %654 = vst.msk [vmem:[%s3 + $0xf8] sm:$0xff] %vm46, %v622
  // Predicated region
  $region14: #{tpu_custom_call.1} parent=0 // pred_check
    _
  $region15: #{tpu_custom_call.1} parent=0 // pred_check_branch
    %656 = sbr.rel (0) target = $region17
  $region16: #{tpu_custom_call.1} parent=0 // pred_region
    _
  $region17: #{tpu_custom_call.1} parent=0 // pred_fallthru
    _
  // Predicated region
  $region18: #{tpu_custom_call.1} parent=0 // pred_check
    _
  $region19: #{tpu_custom_call.1} parent=0 // pred_check_branch
    %658 = sbr.rel (0) target = $region21
  $region20: #{tpu_custom_call.1} parent=0 // pred_region
    _
  $region21: #{tpu_custom_call.1} parent=0 // pred_fallthru
    _

</llo_original>
